<compile_context>
chip_gen: v7x
topology: tpu7x:2x2x1
jax: 0.10.0
libtpu: 0.0.40
codegen_flags: <defaults>
</compile_context>

<pallas_src>
import math

import jax
import jax.numpy as jnp
from jax.experimental import pallas as pl
from jax.experimental.pallas import tpu as pltpu


def _copy_kernel(x_ref, o_ref):
    # Identity copy of one lane-dense block. Flatten semantics live entirely
    # in the (free) row-major reshapes done in the wrapper.
    o_ref[...] = x_ref[...]


# ~2 MiB blocks: at/above the measured roofline plateau, and with
# double-buffered in + out (~4x block) the live VMEM stays ~8 MiB — plenty of
# headroom even on v7x (64 MiB physical / 32 MiB default scoped VMEM).
_TARGET_BLOCK_BYTES = 2 * 1024 * 1024
_MIN_BLOCK_BYTES = 1 * 1024 * 1024
_SMALL_TENSOR_BYTES = 4 * 1024 * 1024   # below this: one block, grid=(1,)
_MIN_LARGE_GRID_STEPS = 8               # >= 4 steps per TensorCore on v7x
_VMEM_LIMIT_BYTES = 24 * 1024 * 1024


def _sublane_multiple(itemsize: int) -> int:
    """Sublane granularity per dtype width: f32->8, bf16/f16->16, int8/fp8->32."""
    return {4: 8, 2: 16, 1: 32}.get(itemsize, 8)


def _pick_tile_rows(rows: int, itemsize: int, sub: int) -> int:
    """Choose the row-tile of the (rows, 128) slab.

    Small tensors: a single block (no serial grid-step overhead on the
    single-TC v5e/v6e). Large tensors: ~2 MiB blocks, shrunk (never below
    ~1 MiB) until the grid has >= 8 steps so v7x's two TensorCores each get
    several pipelined steps.
    """
    bytes_per_row = 128 * itemsize
    total_bytes = rows * bytes_per_row
    if total_bytes <= _SMALL_TENSOR_BYTES:
        return rows

    tile = max(sub, (_TARGET_BLOCK_BYTES // bytes_per_row) // sub * sub)
    tile = min(tile, rows)
    while (pl.cdiv(rows, tile) < _MIN_LARGE_GRID_STEPS
           and tile > sub
           and (tile // 2) * bytes_per_row >= _MIN_BLOCK_BYTES):
        tile = max(sub, (tile // 2) // sub * sub)
    return tile


def _flatten_pallas_copy(x: jax.Array) -> jax.Array:
    """Materialized flatten via a Pallas identity copy (lane-dense slab)."""
    B = x.shape[0]
    F = math.prod(x.shape[1:])
    total = B * F
    itemsize = jnp.dtype(x.dtype).itemsize
    sub = _sublane_multiple(itemsize)
    chunk = sub * 128  # one packed (sub, 128) tile worth of elements

    # Always take the lane/sublane-dense path: pad the flat element count up
    # to a tile multiple instead of falling back to a lane-sparse (B, F) view.
    flat = jnp.reshape(x, (total,))
    padded = pl.cdiv(total, chunk) * chunk
    if padded != total:
        flat = jnp.pad(flat, (0, padded - total))
    rows = padded // 128
    slab = jnp.reshape(flat, (rows, 128))

    tile_rows = _pick_tile_rows(rows, itemsize, sub)
    grid = (pl.cdiv(rows, tile_rows),)  # ragged last block handled by Pallas

    # NOTE: no input_output_aliases — aliasing only avoids an allocation when
    # the input buffer is donatable; otherwise XLA inserts a defensive copy
    # and total HBM traffic grows to ~3x. This path is a plain 2x-bytes copy.
    out = pl.pallas_call(
        _copy_kernel,
        out_shape=jax.ShapeDtypeStruct((rows, 128), x.dtype),
        grid_spec=pl.GridSpec(
            grid=grid,
            in_specs=[pl.BlockSpec((tile_rows, 128), lambda i: (i, 0))],
            out_specs=pl.BlockSpec((tile_rows, 128), lambda i: (i, 0)),
        ),
        compiler_params=pltpu.CompilerParams(
            dimension_semantics=("parallel",),
            vmem_limit_bytes=_VMEM_LIMIT_BYTES,
        ),
    )(slab)

    out_flat = jnp.reshape(out, (padded,))
    if padded != total:
        out_flat = out_flat[:total]
    return jnp.reshape(out_flat, (B, F))


def flatten(x: jax.Array, *, force_pallas_copy: bool = False) -> jax.Array:
    """Equivalent of torch `x.view(x.size(0), -1)`.

    Fast path (default): metadata-only `jnp.reshape` — zero HBM traffic and
    no kernel launch, which is strictly faster than any copy kernel on
    v5e/v6e/v7x. Set `force_pallas_copy=True` to route through the Pallas
    identity-copy kernel (e.g. to force a fresh, materialized buffer).
    """
    B = x.shape[0]
    F = math.prod(x.shape[1:])
    if not force_pallas_copy:
        return jnp.reshape(x, (B, F))
    return _flatten_pallas_copy(x)


if __name__ == "__main__":
    key = jax.random.PRNGKey(0)
    # Small NCHW input consistent with the module's usage in an autoencoder.
    x = jax.random.normal(key, (2, 4, 16, 16), dtype=jnp.float32)

    # Reference: row-major flatten (same semantics as torch .view(B, -1)).
    ref = jnp.reshape(x, (x.shape[0], -1))

    # Fast (reshape-only) path.
    y_fast = jax.block_until_ready(flatten(x))
    assert y_fast.shape == (2, 4 * 16 * 16), y_fast.shape
    assert y_fast.dtype == x.dtype
    assert bool(jnp.all(y_fast == ref))

    # Pallas identity-copy path (exercises the kernel once).
    y_pallas = jax.block_until_ready(flatten(x, force_pallas_copy=True))
    assert y_pallas.shape == (2, 4 * 16 * 16), y_pallas.shape
    assert y_pallas.dtype == x.dtype
    assert bool(jnp.all(y_pallas == ref))

    print("KERNEL_OK")
</pallas_src>

<mosaic_0001>
module attributes {stable_mosaic.version = 11 : i64} {
  func.func @_copy_kernel(%arg0: i32, %arg1: memref<16x128xf32, #tpu.memory_space<vmem>>, %arg2: memref<16x128xf32, #tpu.memory_space<vmem>>) attributes {dimension_semantics = [#tpu.dimension_semantics<parallel>], iteration_bounds = array<i64: 1>, scalar_prefetch = 0 : i64, scratch_operands = 0 : i64, tpu.core_type = #tpu.core_type<tc>, window_params = [{transform_indices = @transform_0, window_bounds = array<i64: 16, 128>}, {transform_indices = @transform_1, window_bounds = array<i64: 16, 128>}]} {
    %c0 = arith.constant 0 : index
    %c0_0 = arith.constant 0 : index
    %0 = vector.load %arg1[%c0, %c0_0] : memref<16x128xf32, #tpu.memory_space<vmem>>, vector<16x128xf32>
    %c0_1 = arith.constant 0 : index
    %c0_2 = arith.constant 0 : index
    %1 = vector.load %arg2[%c0_1, %c0_2] : memref<16x128xf32, #tpu.memory_space<vmem>>, vector<16x128xf32>
    tpu.vector_store %arg2[%c0_1, %c0_2], %0 {strides = array<i32>} : memref<16x128xf32, #tpu.memory_space<vmem>>, vector<16x128xf32>,
    return
  }
  func.func @transform_0(%arg0: i32) -> (i32, i32) {
    %c0_i32 = arith.constant 0 : i32
    %c0_i32_0 = arith.constant 0 : i32
    return %arg0, %c0_i32 : i32, i32
  }
  func.func @transform_1(%arg0: i32) -> (i32, i32) {
    %c0_i32 = arith.constant 0 : i32
    %c0_i32_0 = arith.constant 0 : i32
    return %arg0, %c0_i32 : i32, i32
  }
}

</mosaic_0001>

<llo_original>
// kernel: tpu_custom_call.1
$region0: #{tpu_custom_call.1}
  #allocation0 [shape = 'u32[]', space=smem, size = 0x4, offset = 0x4, fixed_abs, tag = 'smem constant byte address 0x4 - core index']
  #allocation1 [shape = 'u32[144,128]{1,0:T(1,128)}', space=vmem, size = 0x12000, scoped, tag = 'internal scratch']
  %s0 = inlined_call_operand.hbm [shape: f32[16,128], index: 0, kind: input, shape index: {}]
  %s1 = inlined_call_operand.hbm [shape: f32[16,128], index: 1, kind: output, shape index: {}]
  %s2 = sld [smem:[#allocation0]]
  $region18: #{tpu_custom_call.1} parent=0
    _
  %s4 = ssub.s32 1, %s2
  %s5 = scalar_select 0, %s4, %s2
  $region1: #{tpu_custom_call.1} parent=0
    #allocation2 [shape = 'u8[8192]{0}', space=vmem, size = 0x2000, scoped, tag = 'input window, operand 0, single buffered']
    #allocation3 [shape = 's32[1]{0}', space=sflag, size = 0x4, scoped, tag = 'scoped memory for tpu_custom_call.1']
    #allocation4 [shape = 's32[1]{0}', space=sflag, size = 0x4, scoped, tag = 'scoped memory for tpu_custom_call.1']
    #allocation5 [shape = 'u8[8192]{0}', space=vmem, size = 0x2000, scoped, tag = 'output window, operand 0, single buffered']
    %6 = vsyncpa [#allocation3], 0
    %7 = vsyncpa [#allocation4], 0
    // Predicated region
    $region2: #{tpu_custom_call.1} parent=1 // pred_check
      _
    $region3: #{tpu_custom_call.1} parent=1 // pred_check_branch
      %9 = sbr.rel (0) target = $region5
    $region4: #{tpu_custom_call.1} parent=1 // pred_region
      %s11 = ssub.s32 256, 256
      %12 = vsyncadd [#allocation3], %s11
      %s13 = sshll.u32 [#allocation2], 4
      %s14 = int_to_ptr.vmem [resolvable:$true] %s13
      %19 = dma.hbm_to_vmem [thread:$0]  %s0, 256, %s14, [#allocation3], 128, 128, 8
    $region5: #{tpu_custom_call.1} parent=1 // pred_fallthru
      _
    // Predicated region
    $region6: #{tpu_custom_call.1} parent=1 // pred_check
      _
    $region7: #{tpu_custom_call.1} parent=1 // pred_check_branch
      %21 = sbr.rel (0) target = $region9
    $region8: #{tpu_custom_call.1} parent=1 // pred_region
      %22 = dma.done [#allocation3], 256
    $region9: #{tpu_custom_call.1} parent=1 // pred_fallthru
      _
    %v23 = vld [vmem:[#allocation2] sm:$0xff]
    %v24 = vld [vmem:[#allocation2 + $0x8] sm:$0xff]
    %25 = vst [vmem:[#allocation5] sm:$0xff] %v23
    %26 = vst [vmem:[#allocation5 + $0x8] sm:$0xff] %v24
    // Predicated region
    $region10: #{tpu_custom_call.1} parent=1 // pred_check
      _
    $region11: #{tpu_custom_call.1} parent=1 // pred_check_branch
      %28 = sbr.rel (0) target = $region13
    $region12: #{tpu_custom_call.1} parent=1 // pred_region
      %s30 = ssub.s32 256, 256
      %31 = vsyncadd [#allocation4], %s30
      %s32 = sshll.u32 [#allocation5], 4
      %s33 = int_to_ptr.vmem [resolvable:$true] %s32
      %38 = dma.vmem_to_hbm [thread:$0]  %s33, 256, %s1, [#allocation4], 128, 128, 8
    $region13: #{tpu_custom_call.1} parent=1 // pred_fallthru
      _
    // Predicated region
    $region14: #{tpu_custom_call.1} parent=1 // pred_check
      _
    $region15: #{tpu_custom_call.1} parent=1 // pred_check_branch
      %40 = sbr.rel (0) target = $region17
    $region16: #{tpu_custom_call.1} parent=1 // pred_region
      %41 = dma.done [#allocation4], 256
    $region17: #{tpu_custom_call.1} parent=1 // pred_fallthru
      _
    %42 = vsyncpa [#allocation3], 1
    %43 = vsyncpa [#allocation4], 1

</llo_original>
